<compile_context>
chip_gen: v7x
topology: tpu7x:2x2x1
jax: 0.10.0
libtpu: 0.0.40
codegen_flags: <defaults>
</compile_context>

<pallas_src>
import functools

import jax
import jax.numpy as jnp
from jax.experimental import pallas as pl
from jax.experimental.pallas import tpu as pltpu


def _round_up(x: int, m: int) -> int:
    return ((x + m - 1) // m) * m


def _ldam_tile_kernel(y_pred_ref, labels_ref, batch_m_ref, w_ref, out_ref, *, s):
    y_pred = y_pred_ref[...].astype(jnp.float32)      # [Bt, Cp]
    labels = labels_ref[...]                          # [Bt, 1] int32 (-1 => padded row)
    batch_m = batch_m_ref[...]                        # [Bt, 1] f32 (0 for padded rows)
    w = w_ref[...]                                    # [Bt, 1] f32 (0 for padded rows)

    Bt, Cp = y_pred.shape
    class_ids = jax.lax.broadcasted_iota(jnp.int32, (Bt, Cp), 1)
    mask = class_ids == labels                        # bool; all-False for padded rows

    # Margin applied only to the true-class column, fused with the scale:
    #   logits[i, j] = s*y_pred[i, j] - s*batch_m[i] * [j == label_i]
    logits = s * y_pred - jnp.where(mask, s * batch_m, 0.0)          # [Bt, Cp]
    # True-class logit via one masked row-sum (no separate gather/reduction).
    true_logit = jnp.sum(jnp.where(mask, logits, 0.0), axis=-1, keepdims=True)

    # Numerically-stable log-softmax cross entropy.
    row_max = jnp.max(logits, axis=-1, keepdims=True)
    sum_exp = jnp.sum(jnp.exp(logits - row_max), axis=-1, keepdims=True)
    lse = row_max + jnp.log(sum_exp)
    nll = lse - true_logit                                            # [Bt, 1]

    # Weighted-mean numerator / denominator partials for this tile
    # (padded rows have w == 0, so they drop out automatically).
    sum_wn = jnp.sum(w * nll)
    sum_w = jnp.sum(w)

    lane = jax.lax.broadcasted_iota(jnp.int32, out_ref.shape, 2)
    out_ref[...] = jnp.where(lane == 0, sum_wn, jnp.where(lane == 1, sum_w, 0.0))


def ldam_loss(y_pred, y_true, num_class_list, max_m=0.5, weight=None, s=30.0,
              block_rows=None):
    """Pallas implementation of LDAMLoss.forward. Returns a scalar f32 loss."""
    y_pred = jnp.asarray(y_pred)                      # keep dtype (bf16 ok)
    B, C = y_pred.shape

    # --- module __init__ parameter setup (plain JAX glue) ---
    cls_num = jnp.asarray(num_class_list, jnp.float32)
    m_list = 1.0 / jnp.sqrt(jnp.sqrt(cls_num))
    m_list = m_list * (max_m / jnp.max(m_list))

    if weight is None:
        weight_v = jnp.ones((C,), jnp.float32)
    else:
        weight_v = jnp.asarray(weight, jnp.float32).reshape(C)

    labels = jnp.asarray(y_true, jnp.int32).reshape(B)

    # --- per-row gathers hoisted out of the kernel (tiny [B] gathers) ---
    batch_m = jnp.take(m_list, labels)                # [B] f32
    w_row = jnp.take(weight_v, labels)                # [B] f32

    # --- lane-dense class padding (multiple of 128) ---
    # Pad logits with a large finite negative (NOT -inf: avoids 0*(-inf)=NaN).
    Cp = _round_up(C, 128)
    if Cp > C:
        neg_pad = jnp.full((B, Cp - C), -1e30, y_pred.dtype)
        y_pred = jnp.concatenate([y_pred, neg_pad], axis=1)

    # --- VMEM budget derived from the actual chip generation ---
    try:
        vmem_cap = int(pltpu.get_tpu_info().vmem_capacity_bytes)
    except Exception:
        vmem_cap = 64 * 1024 * 1024                   # conservative (v7x-sized)
    vmem_limit = min(vmem_cap * 3 // 4, 96 * 1024 * 1024)   # 48 MiB on v7x, 96 MiB on v5e/v6e

    # --- batch tile size: double-buffered input + live f32 temporaries must fit ---
    itemsize = jnp.dtype(y_pred.dtype).itemsize
    if block_rows is None:
        bytes_per_row = 2 * Cp * itemsize + 4 * Cp * 4   # 2x input bufs + ~4 f32 temps
        budget = int(0.7 * vmem_limit)
        block_rows = max(8, (budget // bytes_per_row) // 8 * 8)
        block_rows = min(block_rows, 8192)
        # TODO(synk): for extremely large Cp the 8-row floor can still exceed VMEM;
        # that regime would need class-dimension tiling of the softmax.
    Bt = min(_round_up(B, 8), _round_up(block_rows, 8))
    # Ensure >= 2 grid steps when the batch allows it so v7x's 2 TensorCores both get work.
    if B > 8 and pl.cdiv(B, Bt) < 2:
        Bt = max(8, _round_up(pl.cdiv(B, 2), 8))
    num_tiles = pl.cdiv(B, Bt)
    Bp = num_tiles * Bt

    if Bp > B:
        y_pred = jnp.concatenate(
            [y_pred, jnp.zeros((Bp - B, Cp), y_pred.dtype)], axis=0)
        labels = jnp.concatenate(
            [labels, jnp.full((Bp - B,), -1, jnp.int32)])    # -1 => masked row
        batch_m = jnp.concatenate([batch_m, jnp.zeros((Bp - B,), jnp.float32)])
        w_row = jnp.concatenate([w_row, jnp.zeros((Bp - B,), jnp.float32)])
    labels = labels.reshape(Bp, 1)
    batch_m = batch_m.reshape(Bp, 1)
    w_row = w_row.reshape(Bp, 1)

    cost = pl.CostEstimate(
        flops=6 * Bp * Cp,
        transcendentals=Bp * Cp + Bp,
        bytes_accessed=Bp * Cp * itemsize + Bp * 12 + num_tiles * 128 * 4,
    )

    partials = pl.pallas_call(
        functools.partial(_ldam_tile_kernel, s=float(s)),
        out_shape=jax.ShapeDtypeStruct((num_tiles, 1, 128), jnp.float32),
        grid=(num_tiles,),
        in_specs=[
            pl.BlockSpec((Bt, Cp), lambda i: (i, 0)),
            pl.BlockSpec((Bt, 1), lambda i: (i, 0)),
            pl.BlockSpec((Bt, 1), lambda i: (i, 0)),
            pl.BlockSpec((Bt, 1), lambda i: (i, 0)),
        ],
        out_specs=pl.BlockSpec((1, 1, 128), lambda i: (i, 0, 0)),
        compiler_params=pltpu.CompilerParams(
            dimension_semantics=("parallel",),
            vmem_limit_bytes=vmem_limit,
        ),
        cost_estimate=cost,
    )(y_pred, labels, batch_m, w_row)

    # Tiny epilogue: reduce per-tile partials, weighted mean.
    # (sum_w == 0 gives inf/NaN, matching torch cross_entropy with all-zero weights.)
    sum_wn = jnp.sum(partials[:, 0, 0])
    sum_w = jnp.sum(partials[:, 0, 1])
    return sum_wn / sum_w


def _ldam_loss_ref(y_pred, y_true, num_class_list, max_m=0.5, weight=None, s=30.0):
    """Pure-JAX reference mirroring the PyTorch module."""
    cls_num = jnp.asarray(num_class_list, jnp.float32)
    m_list = 1.0 / jnp.sqrt(jnp.sqrt(cls_num))
    m_list = m_list * (max_m / jnp.max(m_list))
    B, C = y_pred.shape
    y_pred = jnp.asarray(y_pred, jnp.float32)
    index = jax.nn.one_hot(y_true, C, dtype=jnp.float32)
    batch_m = (index @ m_list).reshape(B, 1)
    output = jnp.where(index > 0, y_pred - batch_m, y_pred)
    logits = s * output
    logz = jax.scipy.special.logsumexp(logits, axis=-1)
    nll = logz - jnp.take_along_axis(logits, y_true[:, None], axis=-1)[:, 0]
    if weight is None:
        w = jnp.ones((B,), jnp.float32)
    else:
        w = jnp.asarray(weight, jnp.float32)[y_true]
    return jnp.sum(w * nll) / jnp.sum(w)


if __name__ == "__main__":
    key = jax.random.PRNGKey(0)

    # Test 1: small, single tile, unweighted (batch=8, classes=16 -> padded to 128 lanes).
    B, C = 8, 16
    k1, k2, k3, k4, k5, k6, k7 = jax.random.split(key, 7)
    y_pred = jax.random.normal(k1, (B, C), dtype=jnp.float32)
    y_true = jax.random.randint(k2, (B,), 0, C)
    num_class_list = [int(5 + 7 * i) for i in range(C)]

    loss = ldam_loss(y_pred, y_true, num_class_list, max_m=0.5, weight=None, s=30.0)
    jax.block_until_ready(loss)
    ref = _ldam_loss_ref(y_pred, y_true, num_class_list, max_m=0.5, weight=None, s=30.0)
    assert jnp.allclose(loss, ref, rtol=1e-4, atol=1e-4), (loss, ref)

    # Test 2: multi-tile + ragged batch + class weights (batch=20, block_rows=8 -> 3 tiles).
    B2, C2 = 20, 16
    y_pred2 = jax.random.normal(k3, (B2, C2), dtype=jnp.float32)
    y_true2 = jax.random.randint(k4, (B2,), 0, C2)
    w_cls = jax.random.uniform(k5, (C2,), minval=0.5, maxval=2.0)

    loss2 = ldam_loss(y_pred2, y_true2, num_class_list, max_m=0.5, weight=w_cls, s=30.0,
                      block_rows=8)
    jax.block_until_ready(loss2)
    ref2 = _ldam_loss_ref(y_pred2, y_true2, num_class_list, max_m=0.5, weight=w_cls, s=30.0)
    assert jnp.allclose(loss2, ref2, rtol=1e-4, atol=1e-4), (loss2, ref2)

    # Test 3: bf16 input + auto tile heuristic + forced 2-tile split (batch=16, classes=40).
    B3, C3 = 16, 40
    y_pred3 = jax.random.normal(k6, (B3, C3), dtype=jnp.float32).astype(jnp.bfloat16)
    y_true3 = jax.random.randint(k7, (B3,), 0, C3)
    num_class_list3 = [int(3 + 5 * i) for i in range(C3)]

    loss3 = ldam_loss(y_pred3, y_true3, num_class_list3, max_m=0.5, weight=None, s=30.0)
    jax.block_until_ready(loss3)
    ref3 = _ldam_loss_ref(y_pred3, y_true3, num_class_list3, max_m=0.5, weight=None, s=30.0)
    assert jnp.allclose(loss3, ref3, rtol=2e-3, atol=2e-3), (loss3, ref3)

    print("KERNEL_OK")
</pallas_src>

<mosaic_0001>
module attributes {stable_mosaic.version = 11 : i64} {
  func.func @_ldam_tile_kernel(%arg0: i32, %arg1: memref<8x128xf32, #tpu.memory_space<vmem>>, %arg2: memref<8x1xi32, #tpu.memory_space<vmem>>, %arg3: memref<8x1xf32, #tpu.memory_space<vmem>>, %arg4: memref<8x1xf32, #tpu.memory_space<vmem>>, %arg5: memref<1x1x128xf32, #tpu.memory_space<vmem>>) attributes {dimension_semantics = [#tpu.dimension_semantics<parallel>], iteration_bounds = array<i64: 1>, scalar_prefetch = 0 : i64, scratch_operands = 0 : i64, tpu.core_type = #tpu.core_type<tc>, window_params = [{transform_indices = @transform_0, window_bounds = array<i64: 8, 128>}, {transform_indices = @transform_1, window_bounds = array<i64: 8, 1>}, {transform_indices = @transform_2, window_bounds = array<i64: 8, 1>}, {transform_indices = @transform_3, window_bounds = array<i64: 8, 1>}, {transform_indices = @transform_4, window_bounds = array<i64: 1, 1, 128>}]} {
    %c0 = arith.constant 0 : index
    %c0_0 = arith.constant 0 : index
    %0 = vector.load %arg1[%c0, %c0_0] : memref<8x128xf32, #tpu.memory_space<vmem>>, vector<8x128xf32>
    %c0_1 = arith.constant 0 : index
    %c0_2 = arith.constant 0 : index
    %1 = vector.load %arg2[%c0_1, %c0_2] : memref<8x1xi32, #tpu.memory_space<vmem>>, vector<8x1xi32>
    %c0_3 = arith.constant 0 : index
    %c0_4 = arith.constant 0 : index
    %2 = vector.load %arg3[%c0_3, %c0_4] : memref<8x1xf32, #tpu.memory_space<vmem>>, vector<8x1xf32>
    %c0_5 = arith.constant 0 : index
    %c0_6 = arith.constant 0 : index
    %3 = vector.load %arg4[%c0_5, %c0_6] : memref<8x1xf32, #tpu.memory_space<vmem>>, vector<8x1xf32>
    %4 = tpu.iota {dimensions = array<i32: 1>} : vector<8x128xi32>
    %5 = vector.broadcast %1 : vector<8x1xi32> to vector<8x128xi32>
    %6 = arith.cmpi eq, %4, %5 : vector<8x128xi32>
    %cst = arith.constant 3.000000e+01 : f32
    %7 = vector.broadcast %cst : f32 to vector<8x128xf32>
    %8 = arith.mulf %7, %0 : vector<8x128xf32>
    %cst_7 = arith.constant 3.000000e+01 : f32
    %9 = vector.broadcast %cst_7 : f32 to vector<8x1xf32>
    %10 = arith.mulf %9, %2 : vector<8x1xf32>
    %cst_8 = arith.constant 0.000000e+00 : f32
    %11 = vector.shape_cast %10 : vector<8x1xf32> to vector<8x1xf32>
    %12 = vector.broadcast %11 : vector<8x1xf32> to vector<8x128xf32>
    %13 = vector.broadcast %cst_8 : f32 to vector<8x128xf32>
    %14 = arith.select %6, %12, %13 : vector<8x128xi1>, vector<8x128xf32>
    %15 = arith.subf %8, %14 : vector<8x128xf32>
    %cst_9 = arith.constant 0.000000e+00 : f32
    %16 = vector.broadcast %cst_9 : f32 to vector<8x128xf32>
    %17 = arith.select %6, %15, %16 : vector<8x128xi1>, vector<8x128xf32>
    %cst_10 = arith.constant dense<0.000000e+00> : vector<8xf32>
    %18 = vector.multi_reduction <add>, %17, %cst_10 [1] : vector<8x128xf32> to vector<8xf32>
    %19 = vector.shape_cast %18 : vector<8xf32> to vector<8x1xf32>
    %cst_11 = arith.constant dense<0xFF800000> : vector<8xf32>
    %20 = vector.multi_reduction <maximumf>, %15, %cst_11 [1] : vector<8x128xf32> to vector<8xf32>
    %21 = vector.shape_cast %20 : vector<8xf32> to vector<8x1xf32>
    %22 = vector.broadcast %21 : vector<8x1xf32> to vector<8x128xf32>
    %23 = arith.subf %15, %22 : vector<8x128xf32>
    %24 = math.exp %23 : vector<8x128xf32>
    %cst_12 = arith.constant dense<0.000000e+00> : vector<8xf32>
    %25 = vector.multi_reduction <add>, %24, %cst_12 [1] : vector<8x128xf32> to vector<8xf32>
    %26 = vector.shape_cast %25 : vector<8xf32> to vector<8x1xf32>
    %27 = math.log %26 : vector<8x1xf32>
    %28 = arith.addf %21, %27 : vector<8x1xf32>
    %29 = arith.subf %28, %19 : vector<8x1xf32>
    %30 = arith.mulf %3, %29 : vector<8x1xf32>
    %31 = vector.shape_cast %30 : vector<8x1xf32> to vector<1x8x1xf32>
    %cst_13 = arith.constant dense<0.000000e+00> : vector<1xf32>
    %32 = vector.multi_reduction <add>, %31, %cst_13 [1, 2] : vector<1x8x1xf32> to vector<1xf32>
    %33 = vector.shape_cast %32 : vector<1xf32> to vector<1x1x1xf32>
    %34 = vector.extract %33[0, 0, 0] : f32 from vector<1x1x1xf32>
    %35 = vector.shape_cast %3 : vector<8x1xf32> to vector<1x8x1xf32>
    %cst_14 = arith.constant dense<0.000000e+00> : vector<1xf32>
    %36 = vector.multi_reduction <add>, %35, %cst_14 [1, 2] : vector<1x8x1xf32> to vector<1xf32>
    %37 = vector.shape_cast %36 : vector<1xf32> to vector<1x1x1xf32>
    %38 = vector.extract %37[0, 0, 0] : f32 from vector<1x1x1xf32>
    %39 = tpu.iota {dimensions = array<i32: 2>} : vector<1x1x128xi32>
    %c0_i32 = arith.constant 0 : i32
    %40 = vector.broadcast %c0_i32 : i32 to vector<1x1x128xi32>
    %41 = arith.cmpi eq, %39, %40 : vector<1x1x128xi32>
    %c1_i32 = arith.constant 1 : i32
    %42 = vector.broadcast %c1_i32 : i32 to vector<1x1x128xi32>
    %43 = arith.cmpi eq, %39, %42 : vector<1x1x128xi32>
    %cst_15 = arith.constant 0.000000e+00 : f32
    %44 = vector.broadcast %38 : f32 to vector<1x1x128xf32>
    %45 = vector.broadcast %cst_15 : f32 to vector<1x1x128xf32>
    %46 = arith.select %43, %44, %45 : vector<1x1x128xi1>, vector<1x1x128xf32>
    %47 = vector.broadcast %34 : f32 to vector<1x1x128xf32>
    %48 = arith.select %41, %47, %46 : vector<1x1x128xi1>, vector<1x1x128xf32>
    %c0_16 = arith.constant 0 : index
    %c0_17 = arith.constant 0 : index
    %c0_18 = arith.constant 0 : index
    %49 = vector.load %arg5[%c0_16, %c0_17, %c0_18] : memref<1x1x128xf32, #tpu.memory_space<vmem>>, vector<1x1x128xf32>
    tpu.vector_store %arg5[%c0_16, %c0_17, %c0_18], %48 {strides = array<i32>} : memref<1x1x128xf32, #tpu.memory_space<vmem>>, vector<1x1x128xf32>,
    return
  }
  func.func @transform_0(%arg0: i32) -> (i32, i32) {
    %c0_i32 = arith.constant 0 : i32
    %c0_i32_0 = arith.constant 0 : i32
    return %arg0, %c0_i32 : i32, i32
  }
  func.func @transform_1(%arg0: i32) -> (i32, i32) {
    %c0_i32 = arith.constant 0 : i32
    %c0_i32_0 = arith.constant 0 : i32
    return %arg0, %c0_i32 : i32, i32
  }
  func.func @transform_2(%arg0: i32) -> (i32, i32) {
    %c0_i32 = arith.constant 0 : i32
    %c0_i32_0 = arith.constant 0 : i32
    return %arg0, %c0_i32 : i32, i32
  }
  func.func @transform_3(%arg0: i32) -> (i32, i32) {
    %c0_i32 = arith.constant 0 : i32
    %c0_i32_0 = arith.constant 0 : i32
    return %arg0, %c0_i32 : i32, i32
  }
  func.func @transform_4(%arg0: i32) -> (i32, i32, i32) {
    %c0_i32 = arith.constant 0 : i32
    %c0_i32_0 = arith.constant 0 : i32
    %c0_i32_1 = arith.constant 0 : i32
    return %arg0, %c0_i32, %c0_i32_0 : i32, i32, i32
  }
}

</mosaic_0001>

<llo_original>
// kernel: tpu_custom_call.1
$region0: #{tpu_custom_call.1}
  #allocation0 [shape = 'u32[]', space=smem, size = 0x4, offset = 0x4, fixed_abs, tag = 'smem constant byte address 0x4 - core index']
  #allocation1 [shape = 'u32[144,128]{1,0:T(1,128)}', space=vmem, size = 0x12000, scoped, tag = 'internal scratch']
  %s0 = inlined_call_operand.vmem [shape: f32[8,128], index: 0, kind: input, shape index: {}]
  %s1 = inlined_call_operand.vmem [shape: s32[8,1], index: 1, kind: input, shape index: {}]
  %s2 = inlined_call_operand.vmem [shape: f32[8,1], index: 2, kind: input, shape index: {}]
  %s3 = inlined_call_operand.vmem [shape: f32[8,1], index: 3, kind: input, shape index: {}]
  %s4 = inlined_call_operand.hbm [shape: f32[1,1,128], index: 4, kind: output, shape index: {}]
  %s5 = sld [smem:[#allocation0]]
  $region26: #{tpu_custom_call.1} parent=0
    _
  %s7 = ssub.s32 1, %s5
  %s8 = scalar_select 0, %s7, %s5
  $region1: #{tpu_custom_call.1} parent=0
    #allocation2 [shape = 'u8[512]{0}', space=vmem, size = 0x400, scoped, tag = 'output window, operand 0, single buffered']
    #allocation3 [shape = 's32[1]{0}', space=sflag, size = 0x4, scoped, tag = 'scoped memory for tpu_custom_call.1']
    %9 = vsyncpa [#allocation3], 0
    // Predicated region
    $region2: #{tpu_custom_call.1} parent=1 // pred_check
      _
    $region3: #{tpu_custom_call.1} parent=1 // pred_check_branch
      %11 = sbr.rel (0) target = $region5
    $region4: #{tpu_custom_call.1} parent=1 // pred_region
      _
    $region5: #{tpu_custom_call.1} parent=1 // pred_fallthru
      _
    // Predicated region
    $region6: #{tpu_custom_call.1} parent=1 // pred_check
      _
    $region7: #{tpu_custom_call.1} parent=1 // pred_check_branch
      %13 = sbr.rel (0) target = $region9
    $region8: #{tpu_custom_call.1} parent=1 // pred_region
      _
    $region9: #{tpu_custom_call.1} parent=1 // pred_fallthru
      _
    // Predicated region
    $region10: #{tpu_custom_call.1} parent=1 // pred_check
      _
    $region11: #{tpu_custom_call.1} parent=1 // pred_check_branch
      %15 = sbr.rel (0) target = $region13
    $region12: #{tpu_custom_call.1} parent=1 // pred_region
      _
    $region13: #{tpu_custom_call.1} parent=1 // pred_fallthru
      _
    // Predicated region
    $region14: #{tpu_custom_call.1} parent=1 // pred_check
      _
    $region15: #{tpu_custom_call.1} parent=1 // pred_check_branch
      %17 = sbr.rel (0) target = $region17
    $region16: #{tpu_custom_call.1} parent=1 // pred_region
      _
    $region17: #{tpu_custom_call.1} parent=1 // pred_fallthru
      _
    %v18 = vld [vmem:[%s0] sm:$0xff]
    %v19 = vld [vmem:[%s1] sm:$0xff]
    %v20 = vld [vmem:[%s2] sm:$0xff]
    %v21 = vld [vmem:[%s3] sm:$0xff]
    %v22 = vlaneseq
    %v23 = vand.u32 %v22, 127
    %24 = vset.pattern.permute.xlu0 0
    %25 = vperm.xlu0 %24, %v19
    %v26 = vpop.permute.xlu0 %25
    %vm27 = vcmp.eq.s32.totalorder %v23, %v26
    %v28 = vmul.f32 %v18, 30.0
    %v29 = vmul.f32 %v20, 30.0
    %31 = vset.pattern.permute.xlu0 0
    %32 = vperm.xlu0 %31, %v29
    %v33 = vpop.permute.xlu0 %32
    %v35 = vsel %vm27, %v33, 0.0
    %v36 = vsub.f32 %v28, %v35
    %v37 = vsel %vm27, %v36, 0.0
    %38 = vadd.xlane.f32.xlu0 %v37
    %v39 = vpop.xlane.xlu0 %38
    %40 = vmax.xlane.f32.xlu0 %v36
    %v41 = vpop.xlane.xlu0 %40
    %v42 = vsub.f32 %v36, %v41
    %v43 = vmul.f32 %v42, 1.442695
    %v44 = vpow.pop %v43
    %45 = vadd.xlane.f32.xlu0 %v44
    %v46 = vpop.xlane.xlu0 %45
    %v47 = vlog2.pop %v46
    %v48 = vmul.f32 %v47, 0.6931472
    %v49 = vadd.f32 %v41, %v48
    %v50 = vsub.f32 %v49, %v39
    %v51 = vmul.f32 %v21, %v50
    %vm52 = vcmask 7168
    %v53 = vsel %vm52, %v51, 0.0
    %54 = vadd.xlane.f32.xlu0 %v53
    %v55 = vpop.xlane.xlu0 %54
    %v56 = vrot.slane %v55, 4
    %v57 = vadd.f32 %v55, %v56
    %v58 = vrot.slane %v57, 2
    %v59 = vadd.f32 %v57, %v58
    %v60 = vrot.slane %v59, 1
    %v61 = vadd.f32 %v59, %v60
    %s62 = vtos %v61
    %v63 = vsel %vm52, %v21, 0.0
    %64 = vadd.xlane.f32.xlu0 %v63
    %v65 = vpop.xlane.xlu0 %64
    %v66 = vrot.slane %v65, 4
    %v67 = vadd.f32 %v65, %v66
    %v68 = vrot.slane %v67, 2
    %v69 = vadd.f32 %v67, %v68
    %v70 = vrot.slane %v69, 1
    %v71 = vadd.f32 %v69, %v70
    %s72 = vtos %v71
    %vm73 = vcmp.eq.s32.totalorder %v23, 0
    %vm74 = vcmp.eq.s32.totalorder %v23, 1
    %v75 = vstv %s72
    %v76 = vsel %vm74, %v75, 0.0
    %v77 = vstv %s62
    %v78 = vsel %vm73, %v77, %v76
    %79 = vst [vmem:[#allocation2] sm:$0x1] %v78
    // Predicated region
    $region18: #{tpu_custom_call.1} parent=1 // pred_check
      _
    $region19: #{tpu_custom_call.1} parent=1 // pred_check_branch
      %81 = sbr.rel (0) target = $region21
    $region20: #{tpu_custom_call.1} parent=1 // pred_region
      %s83 = ssub.s32 16, 16
      %84 = vsyncadd [#allocation3], %s83
      %s86 = sshll.u32 [#allocation2], 4
      %s87 = int_to_ptr.vmem [resolvable:$true] %s86
      %89 = dma.vmem_to_hbm [thread:$0]  %s87, 16, %s4, [#allocation3]
    $region21: #{tpu_custom_call.1} parent=1 // pred_fallthru
      _
    // Predicated region
    $region22: #{tpu_custom_call.1} parent=1 // pred_check
      _
    $region23: #{tpu_custom_call.1} parent=1 // pred_check_branch
      %91 = sbr.rel (0) target = $region25
    $region24: #{tpu_custom_call.1} parent=1 // pred_region
      %92 = dma.done [#allocation3], 16
    $region25: #{tpu_custom_call.1} parent=1 // pred_fallthru
      _
    %93 = vsyncpa [#allocation3], 1

</llo_original>
